<compile_context>
chip_gen: v6e
topology: v6e:2x2x1
jax: 0.10.0
libtpu: 0.0.40
codegen_flags: <defaults>
</compile_context>

<pallas_src>
import jax
import jax.numpy as jnp
import numpy as np
from jax.experimental import pallas as pl
from jax.experimental.pallas import tpu as pltpu


def _fixed_pos_encoder_kernel(pos_hbm, out_hbm, copy_sem):
    # forward(x, padding_mask) -> self.positions : one direct HBM->HBM DMA.
    cp = pltpu.make_async_copy(pos_hbm, out_hbm, copy_sem)
    cp.start()
    cp.wait()


def fixed_positional_encoder(x, padding_mask, positions):
    """Pallas implementation of FixedPositionalEncoder.forward(x, padding_mask)."""
    del x, padding_mask  # the module never reads them
    nbytes = int(np.prod(positions.shape)) * jnp.dtype(positions.dtype).itemsize
    return pl.pallas_call(
        _fixed_pos_encoder_kernel,
        out_shape=jax.ShapeDtypeStruct(positions.shape, positions.dtype),
        in_specs=[pl.BlockSpec(memory_space=pl.ANY)],   # raw HBM ref, no auto-DMA
        out_specs=pl.BlockSpec(memory_space=pl.ANY),    # raw HBM ref, written by DMA
        scratch_shapes=[pltpu.SemaphoreType.DMA(())],
        cost_estimate=pl.CostEstimate(
            flops=0, transcendentals=0, bytes_accessed=2 * nbytes),
    )(positions)


if __name__ == "__main__":
    # Shapes consistent with the module: x is (B, T, C) token features,
    # padding_mask is (B, T), the stored positional embedding is (1, T, C).
    B, T, C = 2, 16, 128

    key = jax.random.PRNGKey(0)
    k_pos, k_x, k_pos2 = jax.random.split(key, 3)
    pos_embed = jax.random.normal(k_pos, (1, T, C), jnp.float32)
    x = jax.random.normal(k_x, (B, T, C), jnp.float32)
    padding_mask = jnp.zeros((B, T), dtype=jnp.bool_)

    out = fixed_positional_encoder(x, padding_mask, pos_embed)
    out = jax.block_until_ready(out)
    np.testing.assert_allclose(np.asarray(out), np.asarray(pos_embed), rtol=0.0, atol=0.0)
    assert out.shape == pos_embed.shape and out.dtype == pos_embed.dtype

    # Ragged / non-(8,128)-aligned table (e.g. 197 ViT patches): still a single
    # full-array HBM->HBM DMA, no masking or padding needed.
    pos_embed2 = jax.random.normal(k_pos2, (1, 197, 96), jnp.float32)
    out2 = fixed_positional_encoder(x, padding_mask, pos_embed2)
    out2 = jax.block_until_ready(out2)
    np.testing.assert_allclose(np.asarray(out2), np.asarray(pos_embed2), rtol=0.0, atol=0.0)
    assert out2.shape == pos_embed2.shape and out2.dtype == pos_embed2.dtype

    print("KERNEL_OK")
</pallas_src>

<mosaic_0001>
module attributes {stable_mosaic.version = 11 : i64} {
  func.func @_fixed_pos_encoder_kernel(%arg0: memref<1x16x128xf32, #tpu.memory_space<any>>, %arg1: memref<1x16x128xf32, #tpu.memory_space<any>>, %arg2: memref<!tpu.dma_semaphore, #tpu.memory_space<semaphore_mem>>) attributes {dimension_semantics = [], scalar_prefetch = 0 : i64, scratch_operands = 1 : i64, tpu.core_type = #tpu.core_type<tc>} {
    tpu.enqueue_dma source(%arg0 : memref<1x16x128xf32, #tpu.memory_space<any>>) target(%arg1 : memref<1x16x128xf32, #tpu.memory_space<any>>) target_semaphore(%arg2 : memref<!tpu.dma_semaphore, #tpu.memory_space<semaphore_mem>>)
    tpu.wait_dma2 semaphore(%arg2 : memref<!tpu.dma_semaphore, #tpu.memory_space<semaphore_mem>>) src(%arg0 : memref<1x16x128xf32, #tpu.memory_space<any>>) dst(%arg1 : memref<1x16x128xf32, #tpu.memory_space<any>>)
    return
  }
}

</mosaic_0001>

<llo_original>
// kernel: tpu_custom_call.1
$region0: #{tpu_custom_call.1}
  #allocation0 [shape = 'u32[]', space=smem, size = 0x4, offset = 0x4, fixed_abs, tag = 'smem constant byte address 0x4 - core index']
  #allocation1 [shape = 'u32[144,128]{1,0:T(1,128)}', space=vmem, size = 0x12000, scoped, tag = 'internal scratch']
  #allocation2 [shape = 's32[1]{0}', space=sflag, size = 0x4, scoped, tag = 'scratch operand']
  #allocation3 [shape = 's32[]', space=sflag, size = 0x4, offset = 0, fixed_abs, tag = 'sflag constant byte address 0x0 - dummy sync flag']
  #allocation4 [shape = 'u32[0]{0}', space=smem, size = 0, offset = 0, fixed_abs, tag = 'smem constant byte address 0x0 - null']
  %s0 = inlined_call_operand.hbm [shape: f32[1,16,128], index: 0, kind: input, shape index: {}]
  %s1 = inlined_call_operand.hbm [shape: f32[1,16,128], index: 1, kind: output, shape index: {}]
  %s2 = sld [smem:[#allocation0]]
  $region2: #{tpu_custom_call.1} parent=0
    _
  %s4 = ssub.s32 1, %s2
  %s5 = scalar_select 0, %s4, %s2
  %s7 = sshll.u32 1, 14
  %s8 = sxor.u32 4294967295, %s7
  %12 = dma.general %s0, 256, %s1, [#allocation2], 131072, [#allocation4], 0, 0
  %s13 = smul.u32 1, 16
  %s14 = smul.u32 %s13, 1
  %s15 = sshll.u32 %s14, 4
  %16 = dma.done [#allocation2], %s15
  %17 = vsyncmov [#allocation2]
  %s18 = vpop.sfrf %17
  %p19 = scmp.eq.s32.totalorder %s18, 0
  %p20 = pneg %p19
  %22 = shalt.err (%p20)

</llo_original>
